<compile_context>
chip_gen: v5e
topology: v5e:2x2
jax: 0.10.0
libtpu: 0.0.40
codegen_flags: <defaults>
</compile_context>

<pallas_src>
import jax
import jax.numpy as jnp
from jax.experimental import pallas as pl
from jax.experimental.pallas import tpu as pltpu


def _round_up(x: int, m: int) -> int:
    return ((x + m - 1) // m) * m


def _nan_mse_kernel(pred_ref, true_ref, sumsq_ref, count_ref, mask_ref):
    # Zero the resident accumulators on the first grid step.
    @pl.when(pl.program_id(0) == 0)
    def _init():
        sumsq_ref[...] = jnp.zeros_like(sumsq_ref)
        count_ref[...] = jnp.zeros_like(count_ref)

    y_pred = pred_ref[...]
    y_true = true_ref[...]

    # mask = ~isnan(y_true)
    mask = jnp.logical_not(jnp.isnan(y_true))
    mask_f = mask.astype(jnp.float32)

    # Exact PyTorch parity: y_pred * mask.float() (NaN in y_pred at a
    # masked-out position still propagates, matching torch).
    y_pred_masked = y_pred * mask_f
    y_true_masked = jnp.where(mask, y_true, jnp.zeros_like(y_true))
    diff = y_pred_masked - y_true_masked
    sq = diff * diff

    # Accumulate per-lane partial sums / counts across the batch grid.
    sumsq_ref[...] += jnp.sum(sq, axis=0, keepdims=True)
    count_ref[...] += jnp.sum(mask_f, axis=0, keepdims=True)

    # int8 mask writeback (4x less HBM traffic than int32).
    mask_ref[...] = mask.astype(jnp.int8)


def _reference_impl(y_pred, y_true):
    mask = ~jnp.isnan(y_true)
    n_valid = jnp.maximum(jnp.sum(mask, axis=0), 1).astype(y_pred.dtype)
    y_pred_masked = y_pred * mask.astype(y_pred.dtype)
    y_true_masked = jnp.where(mask, y_true, jnp.zeros_like(y_true))
    squared_error = (y_pred_masked - y_true_masked) ** 2
    dim_losses = jnp.sum(squared_error, axis=0)
    return dim_losses / n_valid, mask


def multi_dim_nan_tolerant_mse(
    y_pred,
    y_true,
    *,
    block_rows: int = 2048,
    small_size_threshold: int = 32 * 1024,
    force_pallas: bool = False,
):
    assert y_pred.shape == y_true.shape, (
        "Predictions and targets must have the same shape"
    )
    B, D = y_pred.shape
    y_pred = y_pred.astype(jnp.float32)
    y_true = y_true.astype(jnp.float32)

    # Tiny problems: fixed pallas_call launch/DMA overhead dominates, the
    # fused XLA elementwise graph is strictly faster on every generation.
    if not force_pallas and B * D < small_size_threshold:
        return _reference_impl(y_pred, y_true)

    # Lane packing: fold g consecutive batch rows into the 128-lane axis.
    if D < 128 and 128 % D == 0:
        g = 128 // D
    else:
        g = 1
    Dp = g * D

    # Row-tile granularity of 32 so the int8 mask tiles are native-tile
    # aligned; cap the tile so double-buffered f32 inputs + int8 mask stay
    # far below the scoped-VMEM budget on all generations (v7x: 64 MiB phys).
    SUBL = 32
    tb = min(block_rows, max(SUBL, (1 << 18) // Dp))
    tb = _round_up(tb, SUBL)
    rows_packed = -(-B // g)
    tb = min(tb, _round_up(max(rows_packed, 1), SUBL))
    rows_padded = _round_up(max(rows_packed, 1), tb)
    B_padded = rows_padded * g

    pad = B_padded - B
    if pad:
        # Padded rows: y_true = NaN (mask 0, no count), y_pred = 0 (0*0
        # cannot poison the squared-error sum).
        y_true_p = jnp.pad(y_true, ((0, pad), (0, 0)), constant_values=jnp.nan)
        y_pred_p = jnp.pad(y_pred, ((0, pad), (0, 0)), constant_values=0.0)
    else:
        y_true_p, y_pred_p = y_true, y_pred

    pred_packed = y_pred_p.reshape(rows_padded, Dp)
    true_packed = y_true_p.reshape(rows_padded, Dp)

    grid = (rows_padded // tb,)

    cost = pl.CostEstimate(
        flops=6 * rows_padded * Dp,
        transcendentals=0,
        bytes_accessed=2 * rows_padded * Dp * 4 + rows_padded * Dp + 2 * Dp * 4,
    )

    sum_sq, count, mask_i8 = pl.pallas_call(
        _nan_mse_kernel,
        out_shape=(
            jax.ShapeDtypeStruct((1, Dp), jnp.float32),
            jax.ShapeDtypeStruct((1, Dp), jnp.float32),
            jax.ShapeDtypeStruct((rows_padded, Dp), jnp.int8),
        ),
        grid=grid,
        in_specs=[
            pl.BlockSpec((tb, Dp), lambda i: (i, 0)),
            pl.BlockSpec((tb, Dp), lambda i: (i, 0)),
        ],
        out_specs=(
            pl.BlockSpec((1, Dp), lambda i: (0, 0)),   # resident sum accumulator
            pl.BlockSpec((1, Dp), lambda i: (0, 0)),   # resident count accumulator
            pl.BlockSpec((tb, Dp), lambda i: (i, 0)),  # per-tile mask writeback
        ),
        compiler_params=pltpu.CompilerParams(
            dimension_semantics=("arbitrary",),
            vmem_limit_bytes=32 * 1024 * 1024,
        ),
        cost_estimate=cost,
    )(pred_packed, true_packed)

    # Fold the g lane-packed groups back per original dimension, then apply
    # clamp(min=1) and the divide (tiny [g, D] op in fused XLA).
    sum_sq_d = jnp.sum(sum_sq.reshape(g, D), axis=0)
    n_valid = jnp.maximum(jnp.sum(count.reshape(g, D), axis=0), 1.0)
    dim_means = sum_sq_d / n_valid

    mask = mask_i8.reshape(B_padded, D)[:B].astype(jnp.bool_)
    return dim_means, mask


if __name__ == "__main__":
    key = jax.random.PRNGKey(0)

    def make_inputs(k, B, D, nan_frac=0.3):
        k_pred, k_true, k_nan = jax.random.split(k, 3)
        y_pred = jax.random.normal(k_pred, (B, D), dtype=jnp.float32)
        y_true = jax.random.normal(k_true, (B, D), dtype=jnp.float32)
        nan_mask = jax.random.uniform(k_nan, (B, D)) < nan_frac
        y_true = jnp.where(nan_mask, jnp.nan, y_true)
        return y_pred, y_true

    configs = [
        # (batch, dims, block_rows)
        (8, 16, 2048),    # canonical tiny case, lane-packed (g=8), 1 grid step
        (1000, 16, 32),   # lane-packed, multi-step grid + ragged tail padding
        (96, 128, 32),    # full-lane dims (no packing), multi-step grid
    ]
    keys = jax.random.split(key, len(configs))
    for (B, D, br), k in zip(configs, keys):
        y_pred, y_true = make_inputs(k, B, D)
        dim_means, mask = multi_dim_nan_tolerant_mse(
            y_pred, y_true, block_rows=br, force_pallas=True
        )
        jax.block_until_ready((dim_means, mask))

        ref_means, ref_mask = _reference_impl(y_pred, y_true)
        assert dim_means.shape == (D,), (B, D)
        assert mask.shape == (B, D) and mask.dtype == jnp.bool_, (B, D)
        assert jnp.allclose(dim_means, ref_means, atol=1e-5, rtol=1e-5), (B, D)
        assert bool(jnp.all(mask == ref_mask)), (B, D)

    print("KERNEL_OK")
</pallas_src>

<mosaic_0001>
module attributes {stable_mosaic.version = 11 : i64} {
  func.func @_nan_mse_kernel(%arg0: i32, %arg1: memref<32x128xf32, #tpu.memory_space<vmem>>, %arg2: memref<32x128xf32, #tpu.memory_space<vmem>>, %arg3: memref<1x128xf32, #tpu.memory_space<vmem>>, %arg4: memref<1x128xf32, #tpu.memory_space<vmem>>, %arg5: memref<32x128xi8, #tpu.memory_space<vmem>>) attributes {dimension_semantics = [#tpu.dimension_semantics<arbitrary>], iteration_bounds = array<i64: 1>, scalar_prefetch = 0 : i64, scratch_operands = 0 : i64, tpu.core_type = #tpu.core_type<tc>, window_params = [{transform_indices = @transform_0, window_bounds = array<i64: 32, 128>}, {transform_indices = @transform_1, window_bounds = array<i64: 32, 128>}, {pipeline_mode = #tpu.pipeline_mode<synchronous>, transform_indices = @transform_2, window_bounds = array<i64: 1, 128>}, {pipeline_mode = #tpu.pipeline_mode<synchronous>, transform_indices = @transform_3, window_bounds = array<i64: 1, 128>}, {transform_indices = @transform_4, window_bounds = array<i64: 32, 128>}]} {
    %c0_i32 = arith.constant 0 : i32
    %0 = arith.cmpi eq, %arg0, %c0_i32 : i32
    %1 = arith.extui %0 : i1 to i32
    %c0_i32_0 = arith.constant 0 : i32
    %2 = arith.cmpi ne, %1, %c0_i32_0 : i32
    scf.if %2 {
      %cst_17 = arith.constant 0.000000e+00 : f32
      %26 = vector.broadcast %cst_17 : f32 to vector<1x128xf32>
      %c0_18 = arith.constant 0 : index
      %c0_19 = arith.constant 0 : index
      %27 = vector.load %arg3[%c0_18, %c0_19] : memref<1x128xf32, #tpu.memory_space<vmem>>, vector<1x128xf32>
      tpu.vector_store %arg3[%c0_18, %c0_19], %26 {strides = array<i32>} : memref<1x128xf32, #tpu.memory_space<vmem>>, vector<1x128xf32>,
      %cst_20 = arith.constant 0.000000e+00 : f32
      %28 = vector.broadcast %cst_20 : f32 to vector<1x128xf32>
      %c0_21 = arith.constant 0 : index
      %c0_22 = arith.constant 0 : index
      %29 = vector.load %arg4[%c0_21, %c0_22] : memref<1x128xf32, #tpu.memory_space<vmem>>, vector<1x128xf32>
      tpu.vector_store %arg4[%c0_21, %c0_22], %28 {strides = array<i32>} : memref<1x128xf32, #tpu.memory_space<vmem>>, vector<1x128xf32>,
    } else {
    }
    %c0 = arith.constant 0 : index
    %c0_1 = arith.constant 0 : index
    %3 = vector.load %arg1[%c0, %c0_1] : memref<32x128xf32, #tpu.memory_space<vmem>>, vector<32x128xf32>
    %c0_2 = arith.constant 0 : index
    %c0_3 = arith.constant 0 : index
    %4 = vector.load %arg2[%c0_2, %c0_3] : memref<32x128xf32, #tpu.memory_space<vmem>>, vector<32x128xf32>
    %5 = arith.cmpf one, %4, %4 : vector<32x128xf32>
    %cst = arith.constant dense<true> : vector<32x128xi1>
    %6 = arith.xori %5, %cst : vector<32x128xi1>
    %7 = arith.extui %6 : vector<32x128xi1> to vector<32x128xi32>
    %8 = arith.sitofp %7 : vector<32x128xi32> to vector<32x128xf32>
    %9 = arith.mulf %3, %8 : vector<32x128xf32>
    %cst_4 = arith.constant 0.000000e+00 : f32
    %10 = vector.broadcast %cst_4 : f32 to vector<32x128xf32>
    %11 = arith.select %6, %4, %10 : vector<32x128xi1>, vector<32x128xf32>
    %12 = arith.subf %9, %11 : vector<32x128xf32>
    %13 = arith.mulf %12, %12 : vector<32x128xf32>
    %c0_5 = arith.constant 0 : index
    %c0_6 = arith.constant 0 : index
    %14 = vector.load %arg3[%c0_5, %c0_6] : memref<1x128xf32, #tpu.memory_space<vmem>>, vector<1x128xf32>
    %cst_7 = arith.constant dense<0.000000e+00> : vector<128xf32>
    %15 = vector.multi_reduction <add>, %13, %cst_7 [0] : vector<32x128xf32> to vector<128xf32>
    %16 = vector.shape_cast %15 : vector<128xf32> to vector<1x128xf32>
    %17 = arith.addf %14, %16 : vector<1x128xf32>
    %c0_8 = arith.constant 0 : index
    %c0_9 = arith.constant 0 : index
    %18 = vector.load %arg3[%c0_8, %c0_9] : memref<1x128xf32, #tpu.memory_space<vmem>>, vector<1x128xf32>
    tpu.vector_store %arg3[%c0_8, %c0_9], %17 {strides = array<i32>} : memref<1x128xf32, #tpu.memory_space<vmem>>, vector<1x128xf32>,
    %c0_10 = arith.constant 0 : index
    %c0_11 = arith.constant 0 : index
    %19 = vector.load %arg4[%c0_10, %c0_11] : memref<1x128xf32, #tpu.memory_space<vmem>>, vector<1x128xf32>
    %cst_12 = arith.constant dense<0.000000e+00> : vector<128xf32>
    %20 = vector.multi_reduction <add>, %8, %cst_12 [0] : vector<32x128xf32> to vector<128xf32>
    %21 = vector.shape_cast %20 : vector<128xf32> to vector<1x128xf32>
    %22 = arith.addf %19, %21 : vector<1x128xf32>
    %c0_13 = arith.constant 0 : index
    %c0_14 = arith.constant 0 : index
    %23 = vector.load %arg4[%c0_13, %c0_14] : memref<1x128xf32, #tpu.memory_space<vmem>>, vector<1x128xf32>
    tpu.vector_store %arg4[%c0_13, %c0_14], %22 {strides = array<i32>} : memref<1x128xf32, #tpu.memory_space<vmem>>, vector<1x128xf32>,
    %24 = arith.extui %6 : vector<32x128xi1> to vector<32x128xi8>
    %c0_15 = arith.constant 0 : index
    %c0_16 = arith.constant 0 : index
    %25 = vector.load %arg5[%c0_15, %c0_16] : memref<32x128xi8, #tpu.memory_space<vmem>>, vector<32x128xi8>
    tpu.vector_store %arg5[%c0_15, %c0_16], %24 {strides = array<i32>} : memref<32x128xi8, #tpu.memory_space<vmem>>, vector<32x128xi8>,
    return
  }
  func.func @transform_0(%arg0: i32) -> (i32, i32) {
    %c0_i32 = arith.constant 0 : i32
    %c0_i32_0 = arith.constant 0 : i32
    return %arg0, %c0_i32 : i32, i32
  }
  func.func @transform_1(%arg0: i32) -> (i32, i32) {
    %c0_i32 = arith.constant 0 : i32
    %c0_i32_0 = arith.constant 0 : i32
    return %arg0, %c0_i32 : i32, i32
  }
  func.func @transform_2(%arg0: i32) -> (i32, i32) {
    %c0_i32 = arith.constant 0 : i32
    %c0_i32_0 = arith.constant 0 : i32
    %c0_i32_1 = arith.constant 0 : i32
    return %c0_i32, %c0_i32_0 : i32, i32
  }
  func.func @transform_3(%arg0: i32) -> (i32, i32) {
    %c0_i32 = arith.constant 0 : i32
    %c0_i32_0 = arith.constant 0 : i32
    %c0_i32_1 = arith.constant 0 : i32
    return %c0_i32, %c0_i32_0 : i32, i32
  }
  func.func @transform_4(%arg0: i32) -> (i32, i32) {
    %c0_i32 = arith.constant 0 : i32
    %c0_i32_0 = arith.constant 0 : i32
    return %arg0, %c0_i32 : i32, i32
  }
}

</mosaic_0001>

<llo_original>
// kernel: tpu_custom_call.1
$region0: #{tpu_custom_call.1}
  #allocation0 [shape = 'u32[]', space=smem, size = 0x4, offset = 0x4, fixed_abs, tag = 'smem constant byte address 0x4 - core index']
  #allocation1 [shape = 'u32[72,128]{1,0:T(1,128)}', space=vmem, size = 0x9000, scoped, tag = 'internal scratch']
  %s0 = inlined_call_operand.hbm [shape: f32[32,128], index: 0, kind: input, shape index: {}]
  %s1 = inlined_call_operand.hbm [shape: f32[32,128], index: 1, kind: input, shape index: {}]
  %s2 = inlined_call_operand.hbm [shape: f32[1,128], index: 2, kind: output, shape index: {0}]
  %s3 = inlined_call_operand.hbm [shape: f32[1,128], index: 3, kind: output, shape index: {1}]
  %s4 = inlined_call_operand.hbm [shape: s8[32,128], index: 4, kind: output, shape index: {2}]
  %5 = xla_tuple %s2, %s3, %s4
  %s6 = sld [smem:[#allocation0]]
  $region46: #{tpu_custom_call.1} parent=0
    _
  %s8 = ssub.s32 1, %s6
  %s9 = scalar_select 0, %s8, %s6
  $region1: #{tpu_custom_call.1} parent=0
    #allocation2 [shape = 'u8[16384]{0}', space=vmem, size = 0x4000, scoped, tag = 'input window, operand 0, single buffered']
    #allocation3 [shape = 's32[1]{0}', space=sflag, size = 0x4, scoped, tag = 'scoped memory for tpu_custom_call.1']
    #allocation4 [shape = 's32[1]{0}', space=sflag, size = 0x4, scoped, tag = 'scoped memory for tpu_custom_call.1']
    #allocation5 [shape = 'u8[16384]{0}', space=vmem, size = 0x4000, scoped, tag = 'input window, operand 1, single buffered']
    #allocation6 [shape = 's32[1]{0}', space=sflag, size = 0x4, scoped, tag = 'scoped memory for tpu_custom_call.1']
    #allocation7 [shape = 'u8[512]{0}', space=vmem, size = 0x400, scoped, tag = 'output window, operand 0, single buffered']
    #allocation8 [shape = 'u8[512]{0}', space=vmem, size = 0x400, scoped, tag = 'output window, operand 1, single buffered']
    #allocation9 [shape = 's32[1]{0}', space=sflag, size = 0x4, scoped, tag = 'scoped memory for tpu_custom_call.1']
    #allocation10 [shape = 'u8[4096]{0}', space=vmem, size = 0x1000, scoped, tag = 'output window, operand 2, single buffered']
    %10 = vsyncpa [#allocation3], 0
    %11 = vsyncpa [#allocation6], 0
    %12 = vsyncpa [#allocation4], 0
    %13 = vsyncpa [#allocation9], 0
    // Predicated region
    $region2: #{tpu_custom_call.1} parent=1 // pred_check
      _
    $region3: #{tpu_custom_call.1} parent=1 // pred_check_branch
      %15 = sbr.rel (0) target = $region5
    $region4: #{tpu_custom_call.1} parent=1 // pred_region
      %17 = vsyncadd [#allocation3], 0
      %s18 = sshll.u32 %s0, 4
      %s19 = int_to_ptr.hbm [resolvable:$true] %s18
      %s20 = sshll.u32 [#allocation2], 4
      %s21 = int_to_ptr.vmem [resolvable:$true] %s20
      %26 = dma.hbm_to_vmem [thread:$0]  %s19, 512, %s21, [#allocation3], 128, 128, 8
    $region5: #{tpu_custom_call.1} parent=1 // pred_fallthru
      _
    // Predicated region
    $region6: #{tpu_custom_call.1} parent=1 // pred_check
      _
    $region7: #{tpu_custom_call.1} parent=1 // pred_check_branch
      %28 = sbr.rel (0) target = $region9
    $region8: #{tpu_custom_call.1} parent=1 // pred_region
      %30 = vsyncadd [#allocation6], 0
      %s31 = sshll.u32 %s1, 4
      %s32 = int_to_ptr.hbm [resolvable:$true] %s31
      %s33 = sshll.u32 [#allocation5], 4
      %s34 = int_to_ptr.vmem [resolvable:$true] %s33
      %39 = dma.hbm_to_vmem [thread:$0]  %s32, 512, %s34, [#allocation6], 128, 128, 8
    $region9: #{tpu_custom_call.1} parent=1 // pred_fallthru
      _
    // Predicated region
    $region10: #{tpu_custom_call.1} parent=1 // pred_check
      _
    $region11: #{tpu_custom_call.1} parent=1 // pred_check_branch
      %41 = sbr.rel (0) target = $region13
    $region12: #{tpu_custom_call.1} parent=1 // pred_region
      %43 = dma.done [#allocation3], 512
    $region13: #{tpu_custom_call.1} parent=1 // pred_fallthru
      _
    // Predicated region
    $region14: #{tpu_custom_call.1} parent=1 // pred_check
      _
    $region15: #{tpu_custom_call.1} parent=1 // pred_check_branch
      %45 = sbr.rel (0) target = $region17
    $region16: #{tpu_custom_call.1} parent=1 // pred_region
      %47 = dma.done [#allocation6], 512
    $region17: #{tpu_custom_call.1} parent=1 // pred_fallthru
      _
    %p50 = scmp.eq.s32.totalorder 0, 0
    // Predicated region
    $region18: #{tpu_custom_call.1} parent=1 // pred_check
      %p51 = pneg %p50
    $region19: #{tpu_custom_call.1} parent=1 // pred_check_branch
      %53 = sbr.rel (%p51) target = $region21
    $region20: #{tpu_custom_call.1} parent=1 // pred_region
      %54 = vst [vmem:[#allocation7] sm:$0x1] 0.0
      %55 = vst [vmem:[#allocation8] sm:$0x1] 0.0
    $region21: #{tpu_custom_call.1} parent=1 // pred_fallthru
      _
    %v56 = vld [vmem:[#allocation2] sm:$0xff]
    %v57 = vld [vmem:[#allocation2 + $0x8] sm:$0xff]
    %v58 = vld [vmem:[#allocation2 + $0x10] sm:$0xff]
    %v59 = vld [vmem:[#allocation2 + $0x18] sm:$0xff]
    %v60 = vld [vmem:[#allocation5] sm:$0xff]
    %v61 = vld [vmem:[#allocation5 + $0x8] sm:$0xff]
    %v62 = vld [vmem:[#allocation5 + $0x10] sm:$0xff]
    %v63 = vld [vmem:[#allocation5 + $0x18] sm:$0xff]
    %vm64 = vcmp.ne.f32.partialorder %v60, %v60
    %vm65 = vcmp.ne.f32.partialorder %v61, %v61
    %vm66 = vcmp.ne.f32.partialorder %v62, %v62
    %vm67 = vcmp.ne.f32.partialorder %v63, %v63
    %vm68 = vmxor %vm64, 1
    %vm69 = vmxor %vm65, 1
    %vm70 = vmxor %vm66, 1
    %vm71 = vmxor %vm67, 1
    %v72 = vsel %vm68, 1, 0
    %v73 = vsel %vm69, 1, 0
    %v74 = vsel %vm70, 1, 0
    %v75 = vsel %vm71, 1, 0
    %v76 = vcvt.s32.f32 %v72
    %v77 = vcvt.s32.f32 %v73
    %v78 = vcvt.s32.f32 %v74
    %v79 = vcvt.s32.f32 %v75
    %v80 = vmul.f32 %v56, %v76
    %v81 = vmul.f32 %v57, %v77
    %v82 = vmul.f32 %v58, %v78
    %v83 = vmul.f32 %v59, %v79
    %v84 = vsel %vm68, %v60, 0.0
    %v85 = vsel %vm69, %v61, 0.0
    %v86 = vsel %vm70, %v62, 0.0
    %v87 = vsel %vm71, %v63, 0.0
    %v88 = vsub.f32 %v80, %v84
    %v89 = vsub.f32 %v81, %v85
    %v90 = vsub.f32 %v82, %v86
    %v91 = vsub.f32 %v83, %v87
    %v92 = vmul.f32 %v88, %v88
    %v93 = vmul.f32 %v89, %v89
    %v94 = vmul.f32 %v90, %v90
    %v95 = vmul.f32 %v91, %v91
    %v96 = vld [vmem:[#allocation7] sm:$0x1]
    %v97 = vadd.f32 %v92, %v93
    %v98 = vadd.f32 %v97, %v94
    %v99 = vadd.f32 %v98, %v95
    %v100 = vrot.slane %v99, 4
    %v101 = vadd.f32 %v99, %v100
    %v102 = vrot.slane %v101, 2
    %v103 = vadd.f32 %v101, %v102
    %v104 = vrot.slane %v103, 1
    %v105 = vadd.f32 %v103, %v104
    %v106 = vadd.f32 %v96, %v105
    %107 = vst [vmem:[#allocation7] sm:$0x1] %v106
    %v108 = vld [vmem:[#allocation8] sm:$0x1]
    %v109 = vadd.f32 %v76, %v77
    %v110 = vadd.f32 %v109, %v78
    %v111 = vadd.f32 %v110, %v79
    %v112 = vrot.slane %v111, 4
    %v113 = vadd.f32 %v111, %v112
    %v114 = vrot.slane %v113, 2
    %v115 = vadd.f32 %v113, %v114
    %v116 = vrot.slane %v115, 1
    %v117 = vadd.f32 %v115, %v116
    %v118 = vadd.f32 %v108, %v117
    %119 = vst [vmem:[#allocation8] sm:$0x1] %v118
    %vm120 = vmpackc.low %vm69, %vm68
    %vm121 = vmpackc.low %vm71, %vm70
    %v122 = vsel %vm120, 16711935, 0
    %v123 = vsel %vm121, 16711935, 0
    %v124 = vpack.c.b8 %v123, %v122
    %vm125 = vnez %v124
    %v126 = vsel %vm125, 16843009, 0
    %127 = vst [vmem:[#allocation10] sm:$0xff] %v126
    // Predicated region
    $region22: #{tpu_custom_call.1} parent=1 // pred_check
      _
    $region23: #{tpu_custom_call.1} parent=1 // pred_check_branch
      %129 = sbr.rel (0) target = $region25
    $region24: #{tpu_custom_call.1} parent=1 // pred_region
      %131 = vsyncadd [#allocation4], 0
      %s133 = sshll.u32 [#allocation7], 4
      %s134 = int_to_ptr.vmem [resolvable:$true] %s133
      %s135 = sshll.u32 %s2, 4
      %s136 = int_to_ptr.hbm [resolvable:$true] %s135
      %138 = dma.vmem_to_hbm [thread:$0]  %s134, 16, %s136, [#allocation4]
    $region25: #{tpu_custom_call.1} parent=1 // pred_fallthru
      _
    // Predicated region
    $region26: #{tpu_custom_call.1} parent=1 // pred_check
      _
    $region27: #{tpu_custom_call.1} parent=1 // pred_check_branch
      %140 = sbr.rel (0) target = $region29
    $region28: #{tpu_custom_call.1} parent=1 // pred_region
      %142 = vsyncadd [#allocation9], 0
      %s144 = sshll.u32 [#allocation8], 4
      %s145 = int_to_ptr.vmem [resolvable:$true] %s144
      %s146 = sshll.u32 %s3, 4
      %s147 = int_to_ptr.hbm [resolvable:$true] %s146
      %149 = dma.vmem_to_hbm [thread:$0]  %s145, 16, %s147, [#allocation9]
    $region29: #{tpu_custom_call.1} parent=1 // pred_fallthru
      _
    // Predicated region
    $region30: #{tpu_custom_call.1} parent=1 // pred_check
      _
    $region31: #{tpu_custom_call.1} parent=1 // pred_check_branch
      %151 = sbr.rel (0) target = $region33
    $region32: #{tpu_custom_call.1} parent=1 // pred_region
      %153 = vsyncadd [#allocation9], 0
      %s155 = sshll.u32 [#allocation10], 4
      %s156 = int_to_ptr.vmem [resolvable:$true] %s155
      %s157 = sshll.u32 %s4, 4
      %s158 = int_to_ptr.hbm [resolvable:$true] %s157
      %160 = dma.vmem_to_hbm [thread:$0]  %s156, 128, %s158, [#allocation9]
    $region33: #{tpu_custom_call.1} parent=1 // pred_fallthru
      _
    // Predicated region
    $region34: #{tpu_custom_call.1} parent=1 // pred_check
      _
    $region35: #{tpu_custom_call.1} parent=1 // pred_check_branch
      %162 = sbr.rel (0) target = $region37
    $region36: #{tpu_custom_call.1} parent=1 // pred_region
      %164 = dma.done [#allocation4], 16
    $region37: #{tpu_custom_call.1} parent=1 // pred_fallthru
      _
    // Predicated region
    $region38: #{tpu_custom_call.1} parent=1 // pred_check
      _
    $region39: #{tpu_custom_call.1} parent=1 // pred_check_branch
      %166 = sbr.rel (0) target = $region41
    $region40: #{tpu_custom_call.1} parent=1 // pred_region
      %168 = dma.done [#allocation9], 16
    $region41: #{tpu_custom_call.1} parent=1 // pred_fallthru
      _
    // Predicated region
    $region42: #{tpu_custom_call.1} parent=1 // pred_check
      _
    $region43: #{tpu_custom_call.1} parent=1 // pred_check_branch
      %170 = sbr.rel (0) target = $region45
    $region44: #{tpu_custom_call.1} parent=1 // pred_region
      %172 = dma.done [#allocation9], 128
    $region45: #{tpu_custom_call.1} parent=1 // pred_fallthru
      _
    %173 = vsyncpa [#allocation3], 1
    %174 = vsyncpa [#allocation6], 1
    %175 = vsyncpa [#allocation4], 1
    %176 = vsyncpa [#allocation9], 1

</llo_original>
